<compile_context>
chip_gen: v6e
topology: v6e:2x2x1
jax: 0.10.0
libtpu: 0.0.40
codegen_flags: <defaults>
</compile_context>

<pallas_src>
import functools

import jax
import jax.numpy as jnp
from jax.experimental import pallas as pl
from jax.experimental.pallas import tpu as pltpu

NUM_CLASSES = 3      # classes per group
NUM_TASKS = 5        # number of CE terms
_W0, _W1, _W2 = 0.42, 0.14, 0.42   # torch CrossEntropyLoss class weights
_LANE = 128
_NUM_CORES = 2       # leading "parallel" grid axis; uses both TCs on v7x


def _round_up(x: int, m: int) -> int:
    return (x + m - 1) // m * m


def _weighted_nll(l0, l1, l2, lab):
    """Per-lane (w * nll, w) for one [NUM_TASKS, tb] tile (f32 logits, i32 labels)."""
    # 3-transcendental stable LSE: the max term contributes exp(0) = 1.
    m = jnp.maximum(jnp.maximum(l0, l1), l2)
    mn = jnp.minimum(jnp.minimum(l0, l1), l2)
    mid = (l0 + l1 + l2) - m - mn
    lse = m + jnp.log(1.0 + jnp.exp(mid - m) + jnp.exp(mn - m))
    # Target logit / class weight via VPU selects (no one-hot, no XLU gather).
    eq0 = lab == 0
    eq1 = lab == 1
    picked = jnp.where(eq0, l0, jnp.where(eq1, l1, l2))
    wn = jnp.where(eq0, jnp.float32(_W0),
                   jnp.where(eq1, jnp.float32(_W1), jnp.float32(_W2)))
    return wn * (lse - picked), wn


def _myloss_kernel(x_ref, lab_ref, out_ref, num_acc, den_acc, *,
                   batch, steps_per_core):
    """Grid = (core, step). Logits tile [3, 5, tb]; labels tile [5, tb] int8."""
    core = pl.program_id(0)
    step = pl.program_id(1)
    tb = lab_ref.shape[-1]
    tile = core * steps_per_core + step        # logical (unclamped) tile index

    @pl.when(step == 0)
    def _init():
        num_acc[...] = jnp.zeros_like(num_acc)
        den_acc[...] = jnp.zeros_like(den_acc)

    # Class-major slices, batch on lanes; upcast in-kernel (bf16 stays bf16 on HBM).
    l0 = x_ref[0].astype(jnp.float32)
    l1 = x_ref[1].astype(jnp.float32)
    l2 = x_ref[2].astype(jnp.float32)
    lab = lab_ref[...].astype(jnp.int32)

    full = (tile * tb + tb) <= batch           # tile entirely inside the batch?

    @pl.when(full)
    def _full_tile():                          # fast path: no mask math at all
        num, den = _weighted_nll(l0, l1, l2, lab)
        num_acc[...] += num
        den_acc[...] += den

    @pl.when(jnp.logical_not(full))
    def _partial_tile():                       # last / out-of-range tiles only
        lane = jax.lax.broadcasted_iota(jnp.int32, (NUM_TASKS, tb), 1)
        valid = (tile * tb + lane) < batch
        zero = jnp.float32(0.0)
        # Mask the logits themselves so OOB garbage can never create NaN/Inf.
        num, den = _weighted_nll(jnp.where(valid, l0, zero),
                                 jnp.where(valid, l1, zero),
                                 jnp.where(valid, l2, zero), lab)
        num_acc[...] += jnp.where(valid, num, zero)
        den_acc[...] += jnp.where(valid, den, zero)

    @pl.when(step == pl.num_programs(1) - 1)
    def _finalize():
        num = jnp.sum(num_acc[...], axis=-1, keepdims=True)    # [5, 1]
        den = jnp.sum(den_acc[...], axis=-1, keepdims=True)    # [5, 1]
        lane = jax.lax.broadcasted_iota(jnp.int32, (NUM_TASKS, _LANE), 1)
        # Lane 0 = sum(w*nll), lane 1 = sum(w) for this core's batch shard.
        out_ref[0] = jnp.where(lane == 0, num, jnp.where(lane == 1, den, 0.0))


def my_loss(output: jax.Array, label: jax.Array, *, max_tb=None) -> jax.Array:
    """output: [B, 15] float (f32/bf16), label: [B, 5] int -> scalar f32 loss."""
    B = output.shape[0]
    assert output.shape == (B, NUM_TASKS * NUM_CLASSES)
    assert label.shape == (B, NUM_TASKS)

    # Single fused XLA relayout pass: batch -> lane axis, labels narrowed to
    # int8, lane dim padded only to a multiple of 128 (no tile-size padding).
    # TODO(synk): if the logit producer can emit class-major [3,5,B] (+ int8
    # labels) directly, this pass disappears and HBM traffic drops ~2-3x more.
    x = jnp.transpose(output.reshape(B, NUM_TASKS, NUM_CLASSES), (2, 1, 0))
    lab = jnp.transpose(label.astype(jnp.int8), (1, 0))
    bp = _round_up(B, _LANE)
    if bp != B:
        x = jnp.pad(x, ((0, 0), (0, 0), (0, bp - B)))
        lab = jnp.pad(lab, ((0, 0), (0, bp - B)))

    if max_tb is None:
        max_tb = 131072 if jnp.dtype(output.dtype).itemsize <= 2 else 65536
    tb = min(max_tb, bp)                       # multiple of 128 by construction
    num_blocks = -(-bp // tb)
    steps = -(-num_blocks // _NUM_CORES)       # inner steps per core
    last_block = num_blocks - 1

    # Clamp logical tile -> last real block; fully-OOB duplicates are masked to
    # zero contribution inside the kernel (mask uses the unclamped tile index).
    def x_map(c, i):
        return (0, 0, jnp.minimum(c * steps + i, last_block))

    def lab_map(c, i):
        return (0, jnp.minimum(c * steps + i, last_block))

    kernel = functools.partial(_myloss_kernel, batch=B, steps_per_core=steps)

    partials = pl.pallas_call(
        kernel,
        out_shape=jax.ShapeDtypeStruct((_NUM_CORES, NUM_TASKS, _LANE), jnp.float32),
        grid_spec=pltpu.PrefetchScalarGridSpec(
            num_scalar_prefetch=0,
            grid=(_NUM_CORES, steps),
            in_specs=[
                pl.BlockSpec((NUM_CLASSES, NUM_TASKS, tb), x_map),
                pl.BlockSpec((NUM_TASKS, tb), lab_map),
            ],
            out_specs=pl.BlockSpec((1, NUM_TASKS, _LANE), lambda c, i: (c, 0, 0)),
            scratch_shapes=[
                pltpu.VMEM((NUM_TASKS, tb), jnp.float32),   # sum(w * nll)
                pltpu.VMEM((NUM_TASKS, tb), jnp.float32),   # sum(w)
            ],
        ),
        compiler_params=pltpu.CompilerParams(
            dimension_semantics=("parallel", "arbitrary"),  # cores x reduction
            vmem_limit_bytes=32 * 1024 * 1024,
        ),
    )(x, lab)

    # Tiny cross-core / per-group combine in XLA (torch weighted-mean semantics).
    num = jnp.sum(partials[:, :, 0], axis=0)   # [5]
    den = jnp.sum(partials[:, :, 1], axis=0)   # [5]
    return jnp.sum(num / den) / jnp.float32(NUM_TASKS)


def _reference(output, label):
    # Pure-JAX reference of the PyTorch module.
    w = jnp.array([_W0, _W1, _W2], dtype=jnp.float32)
    total = jnp.float32(0.0)
    for i in range(NUM_TASKS):
        logits = output[:, 3 * i:3 * (i + 1)].astype(jnp.float32)
        logz = jax.scipy.special.logsumexp(logits, axis=-1)
        picked = jnp.take_along_axis(logits, label[:, i:i + 1], axis=-1)[:, 0]
        wn = w[label[:, i]]
        total = total + jnp.sum(wn * (logz - picked)) / jnp.sum(wn)
    return total / NUM_TASKS


if __name__ == "__main__":
    key = jax.random.PRNGKey(0)
    k1, k2, k3, k4 = jax.random.split(key, 4)

    # Small shapes implied by the module: output [B, 15], label [B, 5].
    B = 8
    output = jax.random.normal(k1, (B, NUM_TASKS * NUM_CLASSES), dtype=jnp.float32)
    label = jax.random.randint(k2, (B, NUM_TASKS), 0, NUM_CLASSES, dtype=jnp.int32)
    loss = jax.block_until_ready(my_loss(output, label))
    ref = jax.block_until_ready(_reference(output, label))
    assert jnp.allclose(loss, ref, atol=1e-5, rtol=1e-4), (loss, ref)

    # Exercise multi-tile / partial-tile / clamped-tile paths with a tiny tile.
    B2 = 300
    output2 = jax.random.normal(k3, (B2, NUM_TASKS * NUM_CLASSES), dtype=jnp.float32)
    label2 = jax.random.randint(k4, (B2, NUM_TASKS), 0, NUM_CLASSES, dtype=jnp.int32)
    loss2 = jax.block_until_ready(my_loss(output2, label2, max_tb=128))
    ref2 = jax.block_until_ready(_reference(output2, label2))
    assert jnp.allclose(loss2, ref2, atol=1e-5, rtol=1e-4), (loss2, ref2)

    print("KERNEL_OK")
</pallas_src>

<mosaic_0001>
module attributes {stable_mosaic.version = 11 : i64} {
  func.func @_myloss_kernel(%arg0: i32, %arg1: i32, %arg2: memref<3x5x128xf32, #tpu.memory_space<vmem>>, %arg3: memref<5x128xi8, #tpu.memory_space<vmem>>, %arg4: memref<1x5x128xf32, #tpu.memory_space<vmem>>, %arg5: memref<5x128xf32, #tpu.memory_space<vmem>>, %arg6: memref<5x128xf32, #tpu.memory_space<vmem>>) attributes {dimension_semantics = [#tpu.dimension_semantics<parallel>, #tpu.dimension_semantics<arbitrary>], iteration_bounds = array<i64: 2, 1>, scalar_prefetch = 0 : i64, scratch_operands = 2 : i64, tpu.core_type = #tpu.core_type<tc>, window_params = [{transform_indices = @transform_0, window_bounds = array<i64: 3, 5, 128>}, {transform_indices = @transform_1, window_bounds = array<i64: 5, 128>}, {transform_indices = @transform_2, window_bounds = array<i64: 1, 5, 128>}]} {
    %c1_i32 = arith.constant 1 : i32
    %0 = arith.muli %arg0, %c1_i32 : i32
    %1 = arith.addi %0, %arg1 : i32
    %c0_i32 = arith.constant 0 : i32
    %2 = arith.cmpi eq, %arg1, %c0_i32 : i32
    %3 = arith.extui %2 : i1 to i32
    %c0_i32_0 = arith.constant 0 : i32
    %4 = arith.cmpi ne, %3, %c0_i32_0 : i32
    scf.if %4 {
      %cst = arith.constant 0.000000e+00 : f32
      %24 = vector.broadcast %cst : f32 to vector<5x128xf32>
      %c0_14 = arith.constant 0 : index
      %c0_15 = arith.constant 0 : index
      %25 = vector.load %arg5[%c0_14, %c0_15] : memref<5x128xf32, #tpu.memory_space<vmem>>, vector<5x128xf32>
      tpu.vector_store %arg5[%c0_14, %c0_15], %24 {strides = array<i32>} : memref<5x128xf32, #tpu.memory_space<vmem>>, vector<5x128xf32>,
      %cst_16 = arith.constant 0.000000e+00 : f32
      %26 = vector.broadcast %cst_16 : f32 to vector<5x128xf32>
      %c0_17 = arith.constant 0 : index
      %c0_18 = arith.constant 0 : index
      %27 = vector.load %arg6[%c0_17, %c0_18] : memref<5x128xf32, #tpu.memory_space<vmem>>, vector<5x128xf32>
      tpu.vector_store %arg6[%c0_17, %c0_18], %26 {strides = array<i32>} : memref<5x128xf32, #tpu.memory_space<vmem>>, vector<5x128xf32>,
    } else {
    }
    %c0 = arith.constant 0 : index
    %c0_1 = arith.constant 0 : index
    %c0_2 = arith.constant 0 : index
    %5 = vector.load %arg2[%c0, %c0_1, %c0_2] : memref<3x5x128xf32, #tpu.memory_space<vmem>>, vector<1x5x128xf32>
    %6 = vector.shape_cast %5 : vector<1x5x128xf32> to vector<5x128xf32>
    %c1 = arith.constant 1 : index
    %c0_3 = arith.constant 0 : index
    %c0_4 = arith.constant 0 : index
    %7 = vector.load %arg2[%c1, %c0_3, %c0_4] : memref<3x5x128xf32, #tpu.memory_space<vmem>>, vector<1x5x128xf32>
    %8 = vector.shape_cast %7 : vector<1x5x128xf32> to vector<5x128xf32>
    %c2 = arith.constant 2 : index
    %c0_5 = arith.constant 0 : index
    %c0_6 = arith.constant 0 : index
    %9 = vector.load %arg2[%c2, %c0_5, %c0_6] : memref<3x5x128xf32, #tpu.memory_space<vmem>>, vector<1x5x128xf32>
    %10 = vector.shape_cast %9 : vector<1x5x128xf32> to vector<5x128xf32>
    %c0_7 = arith.constant 0 : index
    %c0_8 = arith.constant 0 : index
    %11 = vector.load %arg3[%c0_7, %c0_8] : memref<5x128xi8, #tpu.memory_space<vmem>>, vector<5x128xi8>
    %12 = arith.extsi %11 : vector<5x128xi8> to vector<5x128xi32>
    %c128_i32 = arith.constant 128 : i32
    %13 = arith.muli %1, %c128_i32 : i32
    %c128_i32_9 = arith.constant 128 : i32
    %14 = arith.addi %13, %c128_i32_9 : i32
    %c8_i32 = arith.constant 8 : i32
    %15 = arith.cmpi sle, %14, %c8_i32 : i32
    %16 = arith.extui %15 : i1 to i32
    %c0_i32_10 = arith.constant 0 : i32
    %17 = arith.cmpi ne, %16, %c0_i32_10 : i32
    scf.if %17 {
      %24 = arith.maximumf %6, %8 : vector<5x128xf32>
      %25 = arith.maximumf %24, %10 : vector<5x128xf32>
      %26 = arith.minimumf %6, %8 : vector<5x128xf32>
      %27 = arith.minimumf %26, %10 : vector<5x128xf32>
      %28 = arith.addf %6, %8 : vector<5x128xf32>
      %29 = arith.addf %28, %10 : vector<5x128xf32>
      %30 = arith.subf %29, %25 : vector<5x128xf32>
      %31 = arith.subf %30, %27 : vector<5x128xf32>
      %32 = arith.subf %31, %25 : vector<5x128xf32>
      %33 = math.exp %32 : vector<5x128xf32>
      %cst = arith.constant 1.000000e+00 : f32
      %34 = vector.broadcast %cst : f32 to vector<5x128xf32>
      %35 = arith.addf %34, %33 : vector<5x128xf32>
      %36 = arith.subf %27, %25 : vector<5x128xf32>
      %37 = math.exp %36 : vector<5x128xf32>
      %38 = arith.addf %35, %37 : vector<5x128xf32>
      %39 = math.log %38 : vector<5x128xf32>
      %40 = arith.addf %25, %39 : vector<5x128xf32>
      %c0_i32_14 = arith.constant 0 : i32
      %41 = vector.broadcast %c0_i32_14 : i32 to vector<5x128xi32>
      %42 = arith.cmpi eq, %12, %41 : vector<5x128xi32>
      %c1_i32_15 = arith.constant 1 : i32
      %43 = vector.broadcast %c1_i32_15 : i32 to vector<5x128xi32>
      %44 = arith.cmpi eq, %12, %43 : vector<5x128xi32>
      %45 = arith.select %44, %8, %10 : vector<5x128xi1>, vector<5x128xf32>
      %46 = arith.select %42, %6, %45 : vector<5x128xi1>, vector<5x128xf32>
      %cst_16 = arith.constant 1.400000e-01 : f32
      %cst_17 = arith.constant 4.200000e-01 : f32
      %47 = vector.broadcast %cst_16 : f32 to vector<5x128xf32>
      %48 = vector.broadcast %cst_17 : f32 to vector<5x128xf32>
      %49 = arith.select %44, %47, %48 : vector<5x128xi1>, vector<5x128xf32>
      %cst_18 = arith.constant 4.200000e-01 : f32
      %50 = vector.broadcast %cst_18 : f32 to vector<5x128xf32>
      %51 = arith.select %42, %50, %49 : vector<5x128xi1>, vector<5x128xf32>
      %52 = arith.subf %40, %46 : vector<5x128xf32>
      %53 = arith.mulf %51, %52 : vector<5x128xf32>
      %c0_19 = arith.constant 0 : index
      %c0_20 = arith.constant 0 : index
      %54 = vector.load %arg5[%c0_19, %c0_20] : memref<5x128xf32, #tpu.memory_space<vmem>>, vector<5x128xf32>
      %55 = arith.addf %54, %53 : vector<5x128xf32>
      %c0_21 = arith.constant 0 : index
      %c0_22 = arith.constant 0 : index
      %56 = vector.load %arg5[%c0_21, %c0_22] : memref<5x128xf32, #tpu.memory_space<vmem>>, vector<5x128xf32>
      tpu.vector_store %arg5[%c0_21, %c0_22], %55 {strides = array<i32>} : memref<5x128xf32, #tpu.memory_space<vmem>>, vector<5x128xf32>,
      %c0_23 = arith.constant 0 : index
      %c0_24 = arith.constant 0 : index
      %57 = vector.load %arg6[%c0_23, %c0_24] : memref<5x128xf32, #tpu.memory_space<vmem>>, vector<5x128xf32>
      %58 = arith.addf %57, %51 : vector<5x128xf32>
      %c0_25 = arith.constant 0 : index
      %c0_26 = arith.constant 0 : index
      %59 = vector.load %arg6[%c0_25, %c0_26] : memref<5x128xf32, #tpu.memory_space<vmem>>, vector<5x128xf32>
      tpu.vector_store %arg6[%c0_25, %c0_26], %58 {strides = array<i32>} : memref<5x128xf32, #tpu.memory_space<vmem>>, vector<5x128xf32>,
    } else {
    }
    %true = arith.constant true
    %18 = arith.xori %15, %true : i1
    %19 = arith.extui %18 : i1 to i32
    %c0_i32_11 = arith.constant 0 : i32
    %20 = arith.cmpi ne, %19, %c0_i32_11 : i32
    scf.if %20 {
      %24 = tpu.iota {dimensions = array<i32: 1>} : vector<5x128xi32>
      %c128_i32_14 = arith.constant 128 : i32
      %25 = arith.muli %1, %c128_i32_14 : i32
      %26 = vector.broadcast %25 : i32 to vector<5x128xi32>
      %27 = arith.addi %26, %24 : vector<5x128xi32>
      %c8_i32_15 = arith.constant 8 : i32
      %28 = vector.broadcast %c8_i32_15 : i32 to vector<5x128xi32>
      %29 = arith.cmpi slt, %27, %28 : vector<5x128xi32>
      %cst = arith.constant 0.000000e+00 : f32
      %30 = vector.broadcast %cst : f32 to vector<5x128xf32>
      %31 = arith.select %29, %6, %30 : vector<5x128xi1>, vector<5x128xf32>
      %cst_16 = arith.constant 0.000000e+00 : f32
      %32 = vector.broadcast %cst_16 : f32 to vector<5x128xf32>
      %33 = arith.select %29, %8, %32 : vector<5x128xi1>, vector<5x128xf32>
      %cst_17 = arith.constant 0.000000e+00 : f32
      %34 = vector.broadcast %cst_17 : f32 to vector<5x128xf32>
      %35 = arith.select %29, %10, %34 : vector<5x128xi1>, vector<5x128xf32>
      %36 = arith.maximumf %31, %33 : vector<5x128xf32>
      %37 = arith.maximumf %36, %35 : vector<5x128xf32>
      %38 = arith.minimumf %31, %33 : vector<5x128xf32>
      %39 = arith.minimumf %38, %35 : vector<5x128xf32>
      %40 = arith.addf %31, %33 : vector<5x128xf32>
      %41 = arith.addf %40, %35 : vector<5x128xf32>
      %42 = arith.subf %41, %37 : vector<5x128xf32>
      %43 = arith.subf %42, %39 : vector<5x128xf32>
      %44 = arith.subf %43, %37 : vector<5x128xf32>
      %45 = math.exp %44 : vector<5x128xf32>
      %cst_18 = arith.constant 1.000000e+00 : f32
      %46 = vector.broadcast %cst_18 : f32 to vector<5x128xf32>
      %47 = arith.addf %46, %45 : vector<5x128xf32>
      %48 = arith.subf %39, %37 : vector<5x128xf32>
      %49 = math.exp %48 : vector<5x128xf32>
      %50 = arith.addf %47, %49 : vector<5x128xf32>
      %51 = math.log %50 : vector<5x128xf32>
      %52 = arith.addf %37, %51 : vector<5x128xf32>
      %c0_i32_19 = arith.constant 0 : i32
      %53 = vector.broadcast %c0_i32_19 : i32 to vector<5x128xi32>
      %54 = arith.cmpi eq, %12, %53 : vector<5x128xi32>
      %c1_i32_20 = arith.constant 1 : i32
      %55 = vector.broadcast %c1_i32_20 : i32 to vector<5x128xi32>
      %56 = arith.cmpi eq, %12, %55 : vector<5x128xi32>
      %57 = arith.select %56, %33, %35 : vector<5x128xi1>, vector<5x128xf32>
      %58 = arith.select %54, %31, %57 : vector<5x128xi1>, vector<5x128xf32>
      %cst_21 = arith.constant 1.400000e-01 : f32
      %cst_22 = arith.constant 4.200000e-01 : f32
      %59 = vector.broadcast %cst_21 : f32 to vector<5x128xf32>
      %60 = vector.broadcast %cst_22 : f32 to vector<5x128xf32>
      %61 = arith.select %56, %59, %60 : vector<5x128xi1>, vector<5x128xf32>
      %cst_23 = arith.constant 4.200000e-01 : f32
      %62 = vector.broadcast %cst_23 : f32 to vector<5x128xf32>
      %63 = arith.select %54, %62, %61 : vector<5x128xi1>, vector<5x128xf32>
      %64 = arith.subf %52, %58 : vector<5x128xf32>
      %65 = arith.mulf %63, %64 : vector<5x128xf32>
      %c0_24 = arith.constant 0 : index
      %c0_25 = arith.constant 0 : index
      %66 = vector.load %arg5[%c0_24, %c0_25] : memref<5x128xf32, #tpu.memory_space<vmem>>, vector<5x128xf32>
      %cst_26 = arith.constant 0.000000e+00 : f32
      %67 = vector.broadcast %cst_26 : f32 to vector<5x128xf32>
      %68 = arith.select %29, %65, %67 : vector<5x128xi1>, vector<5x128xf32>
      %69 = arith.addf %66, %68 : vector<5x128xf32>
      %c0_27 = arith.constant 0 : index
      %c0_28 = arith.constant 0 : index
      %70 = vector.load %arg5[%c0_27, %c0_28] : memref<5x128xf32, #tpu.memory_space<vmem>>, vector<5x128xf32>
      tpu.vector_store %arg5[%c0_27, %c0_28], %69 {strides = array<i32>} : memref<5x128xf32, #tpu.memory_space<vmem>>, vector<5x128xf32>,
      %c0_29 = arith.constant 0 : index
      %c0_30 = arith.constant 0 : index
      %71 = vector.load %arg6[%c0_29, %c0_30] : memref<5x128xf32, #tpu.memory_space<vmem>>, vector<5x128xf32>
      %cst_31 = arith.constant 0.000000e+00 : f32
      %72 = vector.broadcast %cst_31 : f32 to vector<5x128xf32>
      %73 = arith.select %29, %63, %72 : vector<5x128xi1>, vector<5x128xf32>
      %74 = arith.addf %71, %73 : vector<5x128xf32>
      %c0_32 = arith.constant 0 : index
      %c0_33 = arith.constant 0 : index
      %75 = vector.load %arg6[%c0_32, %c0_33] : memref<5x128xf32, #tpu.memory_space<vmem>>, vector<5x128xf32>
      tpu.vector_store %arg6[%c0_32, %c0_33], %74 {strides = array<i32>} : memref<5x128xf32, #tpu.memory_space<vmem>>, vector<5x128xf32>,
    } else {
    }
    %c0_i32_12 = arith.constant 0 : i32
    %21 = arith.cmpi eq, %arg1, %c0_i32_12 : i32
    %22 = arith.extui %21 : i1 to i32
    %c0_i32_13 = arith.constant 0 : i32
    %23 = arith.cmpi ne, %22, %c0_i32_13 : i32
    scf.if %23 {
      %c0_14 = arith.constant 0 : index
      %c0_15 = arith.constant 0 : index
      %24 = vector.load %arg5[%c0_14, %c0_15] : memref<5x128xf32, #tpu.memory_space<vmem>>, vector<5x128xf32>
      %cst = arith.constant dense<0.000000e+00> : vector<5xf32>
      %25 = vector.multi_reduction <add>, %24, %cst [1] : vector<5x128xf32> to vector<5xf32>
      %26 = vector.shape_cast %25 : vector<5xf32> to vector<5x1xf32>
      %c0_16 = arith.constant 0 : index
      %c0_17 = arith.constant 0 : index
      %27 = vector.load %arg6[%c0_16, %c0_17] : memref<5x128xf32, #tpu.memory_space<vmem>>, vector<5x128xf32>
      %cst_18 = arith.constant dense<0.000000e+00> : vector<5xf32>
      %28 = vector.multi_reduction <add>, %27, %cst_18 [1] : vector<5x128xf32> to vector<5xf32>
      %29 = vector.shape_cast %28 : vector<5xf32> to vector<5x1xf32>
      %30 = tpu.iota {dimensions = array<i32: 1>} : vector<5x128xi32>
      %c0_i32_19 = arith.constant 0 : i32
      %31 = vector.broadcast %c0_i32_19 : i32 to vector<5x128xi32>
      %32 = arith.cmpi eq, %30, %31 : vector<5x128xi32>
      %c1_i32_20 = arith.constant 1 : i32
      %33 = vector.broadcast %c1_i32_20 : i32 to vector<5x128xi32>
      %34 = arith.cmpi eq, %30, %33 : vector<5x128xi32>
      %cst_21 = arith.constant 0.000000e+00 : f32
      %35 = vector.shape_cast %29 : vector<5x1xf32> to vector<5x1xf32>
      %36 = vector.broadcast %35 : vector<5x1xf32> to vector<5x128xf32>
      %37 = vector.broadcast %cst_21 : f32 to vector<5x128xf32>
      %38 = arith.select %34, %36, %37 : vector<5x128xi1>, vector<5x128xf32>
      %39 = vector.shape_cast %26 : vector<5x1xf32> to vector<5x1xf32>
      %40 = vector.broadcast %39 : vector<5x1xf32> to vector<5x128xf32>
      %41 = arith.select %32, %40, %38 : vector<5x128xi1>, vector<5x128xf32>
      %c0_22 = arith.constant 0 : index
      %c0_23 = arith.constant 0 : index
      %c0_24 = arith.constant 0 : index
      %42 = vector.load %arg4[%c0_22, %c0_23, %c0_24] : memref<1x5x128xf32, #tpu.memory_space<vmem>>, vector<1x5x128xf32>
      %43 = vector.shape_cast %42 : vector<1x5x128xf32> to vector<5x128xf32>
      %44 = vector.shape_cast %41 : vector<5x128xf32> to vector<1x5x128xf32>
      tpu.vector_store %arg4[%c0_22, %c0_23, %c0_24], %44 {strides = array<i32>} : memref<1x5x128xf32, #tpu.memory_space<vmem>>, vector<1x5x128xf32>,
    } else {
    }
    return
  }
  func.func @transform_0(%arg0: i32, %arg1: i32) -> (i32, i32, i32) {
    %c1_i32 = arith.constant 1 : i32
    %0 = arith.muli %arg0, %c1_i32 : i32
    %1 = arith.addi %0, %arg1 : i32
    %c0_i32 = arith.constant 0 : i32
    %2 = arith.minsi %1, %c0_i32 : i32
    %c0_i32_0 = arith.constant 0 : i32
    %c0_i32_1 = arith.constant 0 : i32
    %c0_i32_2 = arith.constant 0 : i32
    return %c0_i32_0, %c0_i32_1, %2 : i32, i32, i32
  }
  func.func @transform_1(%arg0: i32, %arg1: i32) -> (i32, i32) {
    %c1_i32 = arith.constant 1 : i32
    %0 = arith.muli %arg0, %c1_i32 : i32
    %1 = arith.addi %0, %arg1 : i32
    %c0_i32 = arith.constant 0 : i32
    %2 = arith.minsi %1, %c0_i32 : i32
    %c0_i32_0 = arith.constant 0 : i32
    %c0_i32_1 = arith.constant 0 : i32
    return %c0_i32_0, %2 : i32, i32
  }
  func.func @transform_2(%arg0: i32, %arg1: i32) -> (i32, i32, i32) {
    %c0_i32 = arith.constant 0 : i32
    %c0_i32_0 = arith.constant 0 : i32
    %c0_i32_1 = arith.constant 0 : i32
    return %arg0, %c0_i32, %c0_i32_0 : i32, i32, i32
  }
}

</mosaic_0001>

<llo_original>
// kernel: tpu_custom_call.1
$region0: #{tpu_custom_call.1}
  #allocation0 [shape = 'u32[]', space=smem, size = 0x4, offset = 0x4, fixed_abs, tag = 'smem constant byte address 0x4 - core index']
  #allocation1 [shape = 'u32[144,128]{1,0:T(1,128)}', space=vmem, size = 0x12000, scoped, tag = 'internal scratch']
  #allocation2 [shape = 'f32[5,128]{1,0:T(8,128)}', space=vmem, size = 0x1000, scoped, tag = 'scratch operand']
  #allocation3 [shape = 'f32[5,128]{1,0:T(8,128)}', space=vmem, size = 0x1000, scoped, tag = 'scratch operand']
  %s0 = inlined_call_operand.vmem [shape: f32[3,5,128], index: 0, kind: input, shape index: {}]
  %s1 = inlined_call_operand.vmem [shape: s8[5,128], index: 1, kind: input, shape index: {}]
  %s2 = inlined_call_operand.vmem [shape: f32[2,5,128], index: 2, kind: output, shape index: {}]
  %s3 = sld [smem:[#allocation0]]
  $region57: #{tpu_custom_call.1} parent=0
    _
  %s5 = ssub.s32 1, %s3
  %s6 = scalar_select 0, %s5, %s3
  loop: start=0, step=1, limit=4
  $region2: #{tpu_custom_call.1} parent=0 // loop_pre_header
    _
  $region3: #{tpu_custom_call.1} parent=0 // loop_header
    %s8 = sphi 0, %s12
    %p9 = scmp.ge.s32.totalorder %s8, 4
    %s15 = sphi 0, %s27
    %s16 = sphi 0, %s23
    %s17 = sphi 0, %s15
    %s18 = sphi 0, %s16
    %s19 = sphi 0, %s17
    %s20 = sphi 0, %s18
    %s36 = sphi 0, %s38
    %s39 = sphi 0, %s36
    %s40 = sphi 0, %s39
    %s56 = sphi 0, %s40
    %s68 = sphi 0, %s70
    %s71 = sphi 0, %s68
    %s72 = sphi 0, %s71
    %s88 = sphi 0, %s72
    %s94 = sphi 0, %s96
    %s97 = sphi 0, %s94
    %s98 = sphi 0, %s97
    %s114 = sphi 0, %s98
  $region4: #{tpu_custom_call.1} parent=0 // loop_header_branch
    %11 = sbr.rel (%p9) target = $region8
  $region5: #{tpu_custom_call.1} parent=0 // loop_body
    %s13 = ssub.s32 %s8, 1
    %s14 = ssub.s32 %s8, 2
    %s21 = sadd.s32 1, %s16
    %p22 = scmp.ge.s32.totalorder %s21, 1
    %s23 = scalar_select %p22, 0, %s21
    %s24 = sadd.s32 1, %s15
    %s25 = scalar_select %p22, %s24, %s15
    %p26 = scmp.ge.s32.totalorder %s25, 2
    %s27 = scalar_select %p26, 0, %s25
    %s28 = sadd.s32 %s15, %s16
    %p29 = scmp.lt.s32.totalorder %s28, 0
    %s30 = scalar_select %p29, %s28, 0
    %s31 = sadd.s32 %s27, %s23
    %p32 = scmp.lt.s32.totalorder %s31, 0
    %s33 = scalar_select %p32, %s31, 0
    %s34 = ssub.s32 %s30, %s33
    %p35 = scmp.eq.s32.totalorder %s34, 0
    %s37 = sadd.s32 %s36, 1
    %s38 = scalar_select %p35, %s36, %s37
    %p41 = pneg %p35
    %p42 = scmp.eq.s32.totalorder %s8, 1
    %p43 = por %p41, %p42
    %p44 = scmp.ne.s32.totalorder %s36, %s39
    %p45 = scmp.eq.s32.totalorder %s8, 0
    %p46 = por %p44, %p45
    %p47 = scmp.ne.s32.totalorder %s36, %s39
    %p48 = scmp.eq.s32.totalorder %s13, 1
    %p49 = por %p47, %p48
    %p50 = scmp.ne.s32.totalorder %s39, %s40
    %p51 = scmp.eq.s32.totalorder %s13, 0
    %p52 = por %p50, %p51
    %p53 = scmp.ne.s32.totalorder %s39, %s40
    %p54 = scmp.eq.s32.totalorder %s14, 1
    %p55 = por %p53, %p54
    %p57 = scmp.ne.s32.totalorder %s40, %s56
    %p58 = scmp.eq.s32.totalorder %s14, 0
    %p59 = por %p57, %p58
    %s60 = sadd.s32 %s15, %s16
    %p61 = scmp.lt.s32.totalorder %s60, 0
    %s62 = scalar_select %p61, %s60, 0
    %s63 = sadd.s32 %s27, %s23
    %p64 = scmp.lt.s32.totalorder %s63, 0
    %s65 = scalar_select %p64, %s63, 0
    %s66 = ssub.s32 %s62, %s65
    %p67 = scmp.eq.s32.totalorder %s66, 0
    %s69 = sadd.s32 %s68, 1
    %s70 = scalar_select %p67, %s68, %s69
    %p73 = pneg %p67
    %p74 = scmp.eq.s32.totalorder %s8, 1
    %p75 = por %p73, %p74
    %p76 = scmp.ne.s32.totalorder %s68, %s71
    %p77 = scmp.eq.s32.totalorder %s8, 0
    %p78 = por %p76, %p77
    %p79 = scmp.ne.s32.totalorder %s68, %s71
    %p80 = scmp.eq.s32.totalorder %s13, 1
    %p81 = por %p79, %p80
    %p82 = scmp.ne.s32.totalorder %s71, %s72
    %p83 = scmp.eq.s32.totalorder %s13, 0
    %p84 = por %p82, %p83
    %p85 = scmp.ne.s32.totalorder %s71, %s72
    %p86 = scmp.eq.s32.totalorder %s14, 1
    %p87 = por %p85, %p86
    %p89 = scmp.ne.s32.totalorder %s72, %s88
    %p90 = scmp.eq.s32.totalorder %s14, 0
    %p91 = por %p89, %p90
    %s92 = ssub.s32 %s15, %s27
    %p93 = scmp.eq.s32.totalorder %s92, 0
    %s95 = sadd.s32 %s94, 1
    %s96 = scalar_select %p93, %s94, %s95
    %p99 = pneg %p93
    %p100 = scmp.eq.s32.totalorder %s8, 1
    %p101 = por %p99, %p100
    %p102 = scmp.ne.s32.totalorder %s94, %s97
    %p103 = scmp.eq.s32.totalorder %s8, 0
    %p104 = por %p102, %p103
    %p105 = scmp.ne.s32.totalorder %s94, %s97
    %p106 = scmp.eq.s32.totalorder %s13, 1
    %p107 = por %p105, %p106
    %p108 = scmp.ne.s32.totalorder %s97, %s98
    %p109 = scmp.eq.s32.totalorder %s13, 0
    %p110 = por %p108, %p109
    %p111 = scmp.ne.s32.totalorder %s97, %s98
    %p112 = scmp.eq.s32.totalorder %s14, 1
    %p113 = por %p111, %p112
    %p115 = scmp.ne.s32.totalorder %s98, %s114
    %p116 = scmp.eq.s32.totalorder %s14, 0
    %p117 = por %p115, %p116
    %p118 = scmp.le.s32.totalorder 1, %s8
    %p119 = scmp.lt.s32.totalorder %s8, 3
    %p120 = pnand %p118, %p119
    %p121 = pneg %p120
    // Predicated region
    $region9: #{tpu_custom_call.1} parent=5 // pred_check
      _
    $region10: #{tpu_custom_call.1} parent=5 // pred_check_branch
      %123 = sbr.rel (%p120) target = $region12
    $region11: #{tpu_custom_call.1} parent=5 // pred_region
      %s124 = ssub.s32 %s8, 1
    $region12: #{tpu_custom_call.1} parent=5 // pred_fallthru
      _
    %p125 = scmp.lt.s32.totalorder %s8, 2
    // Predicated region
    $region13: #{tpu_custom_call.1} parent=5 // pred_check
      %p126 = pneg %p125
    $region14: #{tpu_custom_call.1} parent=5 // pred_check_branch
      %128 = sbr.rel (%p126) target = $region16
    $region15: #{tpu_custom_call.1} parent=5 // pred_region
      // Predicated region
      $region17: #{tpu_custom_call.1} parent=15 // pred_check
        %p129 = pneg %p46
      $region18: #{tpu_custom_call.1} parent=15 // pred_check_branch
        %131 = sbr.rel (%p129) target = $region20
      $region19: #{tpu_custom_call.1} parent=15 // pred_region
        %s132 = sadd.s32 %s15, %s16
        %p133 = scmp.lt.s32.totalorder %s132, 0
        %s134 = scalar_select %p133, %s132, 0
        %p135 = scmp.lt.s32.totalorder %s134, 0
        %s136 = scalar_select %p135, %s134, 0
        %s137 = smul.addr %s136, 8
        %s138 = scalar_lea.vmem %s0, %s137
        %s139 = sadd.s32 %s15, %s16
        %p140 = scmp.lt.s32.totalorder %s139, 0
        %s141 = scalar_select %p140, %s139, 0
      $region20: #{tpu_custom_call.1} parent=15 // pred_fallthru
        _
      // Predicated region
      $region21: #{tpu_custom_call.1} parent=15 // pred_check
        %p142 = pneg %p78
      $region22: #{tpu_custom_call.1} parent=15 // pred_check_branch
        %144 = sbr.rel (%p142) target = $region24
      $region23: #{tpu_custom_call.1} parent=15 // pred_region
        %s145 = sadd.s32 %s15, %s16
        %p146 = scmp.lt.s32.totalorder %s145, 0
        %s147 = scalar_select %p146, %s145, 0
        %p148 = scmp.lt.s32.totalorder %s147, 0
        %s149 = scalar_select %p148, %s147, 0
        %s150 = smul.addr %s149, 2
        %s151 = scalar_lea.vmem %s1, %s150
        %s152 = sadd.s32 %s15, %s16
        %p153 = scmp.lt.s32.totalorder %s152, 0
        %s154 = scalar_select %p153, %s152, 0
      $region24: #{tpu_custom_call.1} parent=15 // pred_fallthru
        _
    $region16: #{tpu_custom_call.1} parent=5 // pred_fallthru
      _
    %p155 = scmp.le.s32.totalorder 1, %s8
    %p156 = scmp.lt.s32.totalorder %s8, 3
    %p157 = pnand %p155, %p156
    %p158 = pneg %p157
    // Predicated region
    $region25: #{tpu_custom_call.1} parent=5 // pred_check
      _
    $region26: #{tpu_custom_call.1} parent=5 // pred_check_branch
      %160 = sbr.rel (%p157) target = $region28
    $region27: #{tpu_custom_call.1} parent=5 // pred_region
      %s161 = ssub.s32 %s8, 1
      %s162 = sadd.s32 %s17, %s18
      %p163 = scmp.lt.s32.totalorder %s162, 0
      %s164 = scalar_select %p163, %s162, 0
      %p165 = scmp.lt.s32.totalorder %s164, 0
      %s166 = scalar_select %p165, %s164, 0
      %s167 = smul.addr %s166, 8
      %s168 = scalar_lea.vmem %s0, %s167
      %p169 = pneg %p52
      %p170 = pneg %p49
      %s171 = sadd.s32 %s17, %s18
      %p172 = scmp.lt.s32.totalorder %s171, 0
      %s173 = scalar_select %p172, %s171, 0
      %p174 = scmp.lt.s32.totalorder %s173, 0
      %s175 = scalar_select %p174, %s173, 0
      %s176 = smul.addr %s175, 2
      %s177 = scalar_lea.vmem %s1, %s176
      %p178 = pneg %p84
      %p179 = pneg %p81
      %p180 = pneg %p110
      %p181 = pneg %p107
      %p182 = scmp.lt.s32.totalorder %s17, 1
      %s183 = scalar_select %p182, %s17, 1
      %s184 = smul.addr %s183, 8
      %s185 = scalar_lea.vmem %s2, %s184
      %s186 = sadd.s32 %s17, %s18
      %p187 = scmp.lt.s32.totalorder %s186, 0
      %s188 = scalar_select %p187, %s186, 0
      %p189 = scmp.lt.s32.totalorder %s188, 0
      %s190 = scalar_select %p189, %s188, 0
      %s191 = smul.addr %s190, 8
      %s192 = scalar_lea.vmem %s0, %s191
      %s193 = sadd.s32 %s17, %s18
      %p194 = scmp.lt.s32.totalorder %s193, 0
      %s195 = scalar_select %p194, %s193, 0
      %s196 = sadd.s32 %s17, %s18
      %p197 = scmp.lt.s32.totalorder %s196, 0
      %s198 = scalar_select %p197, %s196, 0
      %p199 = scmp.lt.s32.totalorder %s198, 0
      %s200 = scalar_select %p199, %s198, 0
      %s201 = smul.addr %s200, 2
      %s202 = scalar_lea.vmem %s1, %s201
      %s203 = sadd.s32 %s17, %s18
      %p204 = scmp.lt.s32.totalorder %s203, 0
      %s205 = scalar_select %p204, %s203, 0
      %p206 = scmp.lt.s32.totalorder %s17, 1
      %s207 = scalar_select %p206, %s17, 1
      %s208 = smul.addr %s207, 8
      %s209 = scalar_lea.vmem %s2, %s208
      %s210 = sadd.s32 %s17, %s18
      %p211 = scmp.eq.s32.totalorder %s18, 0
      // Predicated region
      $region29: #{tpu_custom_call.1} parent=27 // pred_check
        %p212 = pneg %p211
      $region30: #{tpu_custom_call.1} parent=27 // pred_check_branch
        %214 = sbr.rel (%p212) target = $region32
      $region31: #{tpu_custom_call.1} parent=27 // pred_region
        %215 = vst [vmem:[#allocation2] sm:$0x1f] 0.0
        %216 = vst [vmem:[#allocation3] sm:$0x1f] 0.0
      $region32: #{tpu_custom_call.1} parent=27 // pred_fallthru
        _
      %v217 = vld [vmem:[%s192] sm:$0x1f]
      %s218 = scalar_lea.vmem %s192, 8
      %v219 = vld [vmem:[%s218] sm:$0x1f]
      %s220 = scalar_lea.vmem %s192, 16
      %v221 = vld [vmem:[%s220] sm:$0x1f]
      %v222 = vld [vmem:[%s202] sm:$0x3]
      %v223 = vunpack.c.0.s8 %v222
      %s224 = smul.u32 %s210, 128
      %s225 = sadd.s32 %s224, 128
      %p226 = scmp.le.s32.totalorder %s225, 8
      // Predicated region
      $region33: #{tpu_custom_call.1} parent=27 // pred_check
        %p227 = pneg %p226
      $region34: #{tpu_custom_call.1} parent=27 // pred_check_branch
        %229 = sbr.rel (%p227) target = $region36
      $region35: #{tpu_custom_call.1} parent=27 // pred_region
        %v230 = vmax.f32 %v217, %v219
        %v231 = vmax.f32 %v230, %v221
        %v232 = vmin.f32 %v217, %v219
        %v233 = vmin.f32 %v232, %v221
        %v234 = vadd.f32 %v217, %v219
        %v235 = vadd.f32 %v234, %v221
        %v236 = vsub.f32 %v235, %v231
        %v237 = vsub.f32 %v236, %v233
        %v238 = vsub.f32 %v237, %v231
        %v239 = vmul.f32 %v238, 1.442695
        %v240 = vpow.pop %v239
        %v241 = vadd.f32 %v240, 1.0
        %v242 = vsub.f32 %v233, %v231
        %v243 = vmul.f32 %v242, 1.442695
        %v244 = vpow.pop %v243
        %v245 = vadd.f32 %v241, %v244
        %v246 = vlog2.pop %v245
        %v247 = vmul.f32 %v246, 0.6931472
        %v248 = vadd.f32 %v231, %v247
        %vm249 = vcmp.eq.s32.totalorder %v223, 0
        %vm250 = vcmp.eq.s32.totalorder %v223, 1
        %v251 = vsel %vm250, %v219, %v221
        %v252 = vsel %vm249, %v217, %v251
        %v253 = vsel %vm250, 0.14, 0.42
        %v254 = vsel %vm249, 0.42, %v253
        %v255 = vsub.f32 %v248, %v252
        %v256 = vmul.f32 %v254, %v255
        %v257 = vld [vmem:[#allocation2] sm:$0x1f]
        %v258 = vadd.f32 %v257, %v256
        %259 = vst [vmem:[#allocation2] sm:$0x1f] %v258
        %v260 = vld [vmem:[#allocation3] sm:$0x1f]
        %v261 = vadd.f32 %v260, %v254
        %262 = vst [vmem:[#allocation3] sm:$0x1f] %v261
      $region36: #{tpu_custom_call.1} parent=27 // pred_fallthru
        _
      %p263 = scmp.gt.s32.totalorder %s225, 8
      // Predicated region
      $region37: #{tpu_custom_call.1} parent=27 // pred_check
        %p264 = pneg %p263
      $region38: #{tpu_custom_call.1} parent=27 // pred_check_branch
        %266 = sbr.rel (%p264) target = $region40
      $region39: #{tpu_custom_call.1} parent=27 // pred_region
        %v267 = vlaneseq
        %v268 = vand.u32 %v267, 127
        %v269 = vstv %s224
        %v270 = vadd.s32 %v269, %v268
        %vm271 = vcmp.lt.s32.totalorder %v270, 8
        %v272 = vsel %vm271, %v217, 0.0
        %v273 = vsel %vm271, %v219, 0.0
        %v274 = vsel %vm271, %v221, 0.0
        %v275 = vmax.f32 %v272, %v273
        %v276 = vmax.f32 %v275, %v274
        %v277 = vmin.f32 %v272, %v273
        %v278 = vmin.f32 %v277, %v274
        %v279 = vadd.f32 %v272, %v273
        %v280 = vadd.f32 %v279, %v274
        %v281 = vsub.f32 %v280, %v276
        %v282 = vsub.f32 %v281, %v278
        %v283 = vsub.f32 %v282, %v276
        %v284 = vmul.f32 %v283, 1.442695
        %v285 = vpow.pop %v284
        %v286 = vadd.f32 %v285, 1.0
        %v287 = vsub.f32 %v278, %v276
        %v288 = vmul.f32 %v287, 1.442695
        %v289 = vpow.pop %v288
        %v290 = vadd.f32 %v286, %v289
        %v291 = vlog2.pop %v290
        %v292 = vmul.f32 %v291, 0.6931472
        %v293 = vadd.f32 %v276, %v292
        %vm294 = vcmp.eq.s32.totalorder %v223, 0
        %vm295 = vcmp.eq.s32.totalorder %v223, 1
        %v296 = vsel %vm295, %v273, %v274
        %v297 = vsel %vm294, %v272, %v296
        %v298 = vsel %vm295, 0.14, 0.42
        %v299 = vsel %vm294, 0.42, %v298
        %v300 = vsub.f32 %v293, %v297
        %v301 = vmul.f32 %v299, %v300
        %v302 = vld [vmem:[#allocation2] sm:$0x1f]
        %v303 = vsel %vm271, %v301, 0.0
        %v304 = vadd.f32 %v302, %v303
        %305 = vst [vmem:[#allocation2] sm:$0x1f] %v304
        %v306 = vld [vmem:[#allocation3] sm:$0x1f]
        %v307 = vsel %vm271, %v299, 0.0
        %v308 = vadd.f32 %v306, %v307
        %309 = vst [vmem:[#allocation3] sm:$0x1f] %v308
      $region40: #{tpu_custom_call.1} parent=27 // pred_fallthru
        _
      // Predicated region
      $region41: #{tpu_custom_call.1} parent=27 // pred_check
        %p310 = pneg %p211
      $region42: #{tpu_custom_call.1} parent=27 // pred_check_branch
        %312 = sbr.rel (%p310) target = $region44
      $region43: #{tpu_custom_call.1} parent=27 // pred_region
        %v313 = vld [vmem:[#allocation2] sm:$0x1f]
        %vm314 = vcmask 1044480
        %v315 = vsel %vm314, %v313, 0.0
        %316 = vadd.xlane.f32.xlu0 %v315
        %v317 = vpop.xlane.xlu0 %316
        %v318 = vld [vmem:[#allocation3] sm:$0x1f]
        %v319 = vsel %vm314, %v318, 0.0
        %320 = vadd.xlane.f32.xlu0 %v319
        %v321 = vpop.xlane.xlu0 %320
        %v322 = vlaneseq
        %v323 = vand.u32 %v322, 127
        %vm324 = vcmp.eq.s32.totalorder %v323, 0
        %vm325 = vcmp.eq.s32.totalorder %v323, 1
        %v326 = vsel %vm325, %v321, 0.0
        %v327 = vsel %vm324, %v317, %v326
        %328 = vst [vmem:[%s209] sm:$0x1f] %v327
      $region44: #{tpu_custom_call.1} parent=27 // pred_fallthru
        _
      %p329 = scmp.lt.s32.totalorder %s17, 1
      %s330 = scalar_select %p329, %s17, 1
      %s331 = smul.addr %s330, 8
      %s332 = scalar_lea.vmem %s2, %s331
      // Predicated region
      $region45: #{tpu_custom_call.1} parent=27 // pred_check
        %p333 = pneg %p107
      $region46: #{tpu_custom_call.1} parent=27 // pred_check_branch
        %335 = sbr.rel (%p333) target = $region48
      $region47: #{tpu_custom_call.1} parent=27 // pred_region
        _
      $region48: #{tpu_custom_call.1} parent=27 // pred_fallthru
        _
    $region28: #{tpu_custom_call.1} parent=5 // pred_fallthru
      _
    %p336 = scmp.le.s32.totalorder 2, %s8
    // Predicated region
    $region49: #{tpu_custom_call.1} parent=5 // pred_check
      %p337 = pneg %p336
    $region50: #{tpu_custom_call.1} parent=5 // pred_check_branch
      %339 = sbr.rel (%p337) target = $region52
    $region51: #{tpu_custom_call.1} parent=5 // pred_region
      %s340 = ssub.s32 %s8, 2
      // Predicated region
      $region53: #{tpu_custom_call.1} parent=51 // pred_check
        %p341 = pneg %p113
      $region54: #{tpu_custom_call.1} parent=51 // pred_check_branch
        %343 = sbr.rel (%p341) target = $region56
      $region55: #{tpu_custom_call.1} parent=51 // pred_region
        %p344 = scmp.lt.s32.totalorder %s19, 1
        %s345 = scalar_select %p344, %s19, 1
        %s346 = smul.addr %s345, 8
        %s347 = scalar_lea.vmem %s2, %s346
      $region56: #{tpu_custom_call.1} parent=51 // pred_fallthru
        _
    $region52: #{tpu_custom_call.1} parent=5 // pred_fallthru
      _
  $region6: #{tpu_custom_call.1} parent=0 // loop_footer
    %s12 = sadd.s32 1, %s8
  $region7: #{tpu_custom_call.1} parent=0 // loop_footer_branch
    %7 = sbr.rel target = $region3
  $region8: #{tpu_custom_call.1} parent=0 // loop_exit
    _

</llo_original>
